<compile_context>
chip_gen: v7x
topology: tpu7x:2x2x1
jax: 0.10.0
libtpu: 0.0.40
codegen_flags: <defaults>
</compile_context>

<pallas_src>
import jax
import jax.numpy as jnp
from jax.experimental import pallas as pl
from jax.experimental.pallas import tpu as pltpu

LANE = 128                     # TPU lane width (last dim of every vreg)
_PALLAS_MIN_ELEMS = 1 << 16    # below this the pallas_call fixed cost dominates


def _round_up(x, m):
    return ((x + m - 1) // m) * m


def _sublane_min(dtype):
    # Native second-minor tile: 8 for 4-byte, 16 for 2-byte, 32 for 1-byte dtypes.
    return 32 // jnp.dtype(dtype).itemsize


def _default_tile_rows():
    # Per-generation block sizing (rows of 128 lanes):
    #   v5e:      2048 rows -> ~7 MiB double-buffered working set (16 MiB scoped VMEM)
    #   v6e/v7x:  4096 rows -> ~14 MiB working set (32 MiB scoped VMEM default)
    try:
        kind = jax.devices()[0].device_kind.lower()
    except Exception:
        return 2048
    if "v6" in kind or "trillium" in kind or "v7" in kind:
        return 4096
    return 2048


def _masked_l1_kernel(a_ref, b_ref, m_ref, o_ref):
    # Pure VPU elementwise on a lane-dense (tile_rows, 128) tile.
    # The int8 -> data-dtype cast of the mask is free (VALU slack in a mem-bound kernel).
    m = m_ref[...].astype(o_ref.dtype)
    o_ref[...] = jnp.abs(a_ref[...] - b_ref[...]) * m


def _l1_xla(joint_out, joint_gt, joint_valid):
    # Fused XLA path for tiny / awkward shapes.
    return jnp.abs(joint_out - joint_gt) * joint_valid.astype(joint_out.dtype)[:, :, None]


def joint_l1_loss(joint_out, joint_gt, joint_valid, *,
                  tile_rows=None, use_pallas=None, mask_dtype=jnp.int8):
    """Pallas equivalent of JointL1Loss.forward: |out - gt| * valid[:, :, None]."""
    assert joint_out.shape == joint_gt.shape
    assert joint_valid.shape == joint_out.shape[:2]
    B, J, D = joint_out.shape
    total = B * J * D
    dtype = joint_out.dtype
    lane_divisible = (total % LANE == 0)

    if use_pallas is None:
        # Auto: only take the kernel path when it is a pure zero-copy win
        # (large AND lane-divisible); otherwise XLA fusion is already optimal.
        use_pallas = lane_divisible and total >= _PALLAS_MIN_ELEMS
    if not use_pallas or total < LANE:
        return _l1_xla(joint_out, joint_gt, joint_valid)

    # ---- mask: transport as int8 (0/1), broadcast once to (B, J, D) ----------
    # (4x less HBM traffic than a full f32 mask; exact for binary validity masks.)
    mask_bjd = jnp.broadcast_to(
        joint_valid.astype(mask_dtype)[:, :, None], (B, J, D))

    a_flat = joint_out.reshape(-1)       # bitcast, copy-free
    b_flat = joint_gt.reshape(-1)
    m_flat = mask_bjd.reshape(-1)

    main = (total // LANE) * LANE        # 128-aligned prefix handled by the kernel
    rows = main // LANE
    tail = total - main                  # <= 127 elements handled by XLA

    # ---- tile sizing ----------------------------------------------------------
    sublane = max(_sublane_min(dtype), _sublane_min(mask_dtype))
    if tile_rows is None:
        tile_rows = _default_tile_rows()
    if rows < sublane:
        # Single block equal to the full (tiny) array: uses the full-dim escape
        # from the sublane-divisibility rule.
        tile_rows = rows
    else:
        tile_rows = _round_up(max(tile_rows, sublane), sublane)
        # Guarantee >= 2 grid steps when possible so the "parallel" row axis can
        # be sharded across both v7x TensorCores (no-op on v5e/v6e).
        tile_rows = max(sublane,
                        min(tile_rows, _round_up(pl.cdiv(rows, 2), sublane)))

    def main_view(x):
        x = x if main == total else x[:main]
        return x.reshape(rows, LANE)     # copy-free when main == total

    spec = pl.BlockSpec((tile_rows, LANE), lambda i: (i, 0))
    out_main = pl.pallas_call(
        _masked_l1_kernel,
        out_shape=jax.ShapeDtypeStruct((rows, LANE), dtype),
        grid_spec=pltpu.PrefetchScalarGridSpec(
            num_scalar_prefetch=0,
            grid=(pl.cdiv(rows, tile_rows),),   # ragged last block: OOB writes dropped
            in_specs=[spec, spec, spec],
            out_specs=spec,
        ),
        compiler_params=pltpu.CompilerParams(
            dimension_semantics=("parallel",)),
    )(main_view(a_flat), main_view(b_flat), main_view(m_flat))

    out_flat = out_main.reshape(-1)
    if tail:
        # TODO(synk): a fully copy-free ragged tail would need a manual
        # pl.ANY + make_async_copy path; the <=127-element XLA tail + concat is
        # simpler, and the auto heuristic avoids this branch anyway.
        out_tail = (jnp.abs(a_flat[main:] - b_flat[main:])
                    * m_flat[main:].astype(dtype))
        out_flat = jnp.concatenate([out_flat, out_tail])
    return out_flat.reshape(B, J, D)


if __name__ == "__main__":
    def ref_loss(a, b, v):
        return jnp.abs(a - b) * v.astype(a.dtype)[:, :, None]

    key = jax.random.PRNGKey(0)

    # 1) Kernel path, zero-copy lane-dense view: B*J*D = 2*16*4 = 128.
    k1, k2, k3 = jax.random.split(jax.random.fold_in(key, 1), 3)
    B, J, D = 2, 16, 4
    a = jax.random.normal(k1, (B, J, D), dtype=jnp.float32)
    b = jax.random.normal(k2, (B, J, D), dtype=jnp.float32)
    v = (jax.random.uniform(k3, (B, J)) > 0.3).astype(jnp.float32)
    out = jax.block_until_ready(joint_l1_loss(a, b, v, use_pallas=True))
    assert out.shape == (B, J, D)
    assert jnp.allclose(out, ref_loss(a, b, v), atol=1e-6, rtol=1e-6)

    # 2) Canonical module shape (2, 16, 3): auto heuristic -> fused XLA fallback.
    k1, k2, k3 = jax.random.split(jax.random.fold_in(key, 2), 3)
    a = jax.random.normal(k1, (2, 16, 3), dtype=jnp.float32)
    b = jax.random.normal(k2, (2, 16, 3), dtype=jnp.float32)
    v = (jax.random.uniform(k3, (2, 16)) > 0.3).astype(jnp.float32)
    out = jax.block_until_ready(joint_l1_loss(a, b, v))
    assert jnp.allclose(out, ref_loss(a, b, v), atol=1e-6, rtol=1e-6)

    # 3) Multi-step ragged grid: 40*128*3 -> 120 rows, tile_rows=32 -> grid=(4,)
    #    with a masked last block (only 24 of 32 rows valid).
    k1, k2, k3 = jax.random.split(jax.random.fold_in(key, 3), 3)
    B, J, D = 40, 128, 3
    a = jax.random.normal(k1, (B, J, D), dtype=jnp.float32)
    b = jax.random.normal(k2, (B, J, D), dtype=jnp.float32)
    v = (jax.random.uniform(k3, (B, J)) > 0.5).astype(jnp.float32)
    out = jax.block_until_ready(joint_l1_loss(a, b, v, tile_rows=32, use_pallas=True))
    assert jnp.allclose(out, ref_loss(a, b, v), atol=1e-6, rtol=1e-6)

    # 4) Non-lane-divisible total (32*125*3 = 12000): kernel prefix + XLA tail.
    k1, k2, k3 = jax.random.split(jax.random.fold_in(key, 4), 3)
    B, J, D = 32, 125, 3
    a = jax.random.normal(k1, (B, J, D), dtype=jnp.float32)
    b = jax.random.normal(k2, (B, J, D), dtype=jnp.float32)
    v = (jax.random.uniform(k3, (B, J)) > 0.5).astype(jnp.float32)
    out = jax.block_until_ready(joint_l1_loss(a, b, v, tile_rows=64, use_pallas=True))
    assert jnp.allclose(out, ref_loss(a, b, v), atol=1e-6, rtol=1e-6)

    # 5) bf16 data (exercises the dtype-dependent sublane minimum).
    k1, k2, k3 = jax.random.split(jax.random.fold_in(key, 5), 3)
    B, J, D = 8, 16, 4
    a = jax.random.normal(k1, (B, J, D), dtype=jnp.bfloat16)
    b = jax.random.normal(k2, (B, J, D), dtype=jnp.bfloat16)
    v = (jax.random.uniform(k3, (B, J)) > 0.4).astype(jnp.float32)
    out = jax.block_until_ready(joint_l1_loss(a, b, v, use_pallas=True))
    r = ref_loss(a, b, v)
    assert jnp.allclose(out.astype(jnp.float32), r.astype(jnp.float32),
                        atol=1e-2, rtol=1e-2)

    print("KERNEL_OK")
</pallas_src>

<mosaic_0001>
module attributes {stable_mosaic.version = 11 : i64} {
  func.func @_masked_l1_kernel(%arg0: i32, %arg1: memref<1x128xf32, #tpu.memory_space<vmem>>, %arg2: memref<1x128xf32, #tpu.memory_space<vmem>>, %arg3: memref<1x128xi8, #tpu.memory_space<vmem>>, %arg4: memref<1x128xf32, #tpu.memory_space<vmem>>) attributes {dimension_semantics = [#tpu.dimension_semantics<parallel>], iteration_bounds = array<i64: 1>, scalar_prefetch = 0 : i64, scratch_operands = 0 : i64, tpu.core_type = #tpu.core_type<tc>, window_params = [{transform_indices = @transform_0, window_bounds = array<i64: 1, 128>}, {transform_indices = @transform_1, window_bounds = array<i64: 1, 128>}, {transform_indices = @transform_2, window_bounds = array<i64: 1, 128>}, {transform_indices = @transform_3, window_bounds = array<i64: 1, 128>}]} {
    %c0 = arith.constant 0 : index
    %c0_0 = arith.constant 0 : index
    %0 = vector.load %arg3[%c0, %c0_0] : memref<1x128xi8, #tpu.memory_space<vmem>>, vector<1x128xi8>
    %1 = arith.sitofp %0 : vector<1x128xi8> to vector<1x128xf32>
    %c0_1 = arith.constant 0 : index
    %c0_2 = arith.constant 0 : index
    %2 = vector.load %arg1[%c0_1, %c0_2] : memref<1x128xf32, #tpu.memory_space<vmem>>, vector<1x128xf32>
    %c0_3 = arith.constant 0 : index
    %c0_4 = arith.constant 0 : index
    %3 = vector.load %arg2[%c0_3, %c0_4] : memref<1x128xf32, #tpu.memory_space<vmem>>, vector<1x128xf32>
    %4 = arith.subf %2, %3 : vector<1x128xf32>
    %5 = math.absf %4 : vector<1x128xf32>
    %6 = arith.mulf %5, %1 : vector<1x128xf32>
    %c0_5 = arith.constant 0 : index
    %c0_6 = arith.constant 0 : index
    %7 = vector.load %arg4[%c0_5, %c0_6] : memref<1x128xf32, #tpu.memory_space<vmem>>, vector<1x128xf32>
    tpu.vector_store %arg4[%c0_5, %c0_6], %6 {strides = array<i32>} : memref<1x128xf32, #tpu.memory_space<vmem>>, vector<1x128xf32>,
    return
  }
  func.func @transform_0(%arg0: i32) -> (i32, i32) {
    %c0_i32 = arith.constant 0 : i32
    %c0_i32_0 = arith.constant 0 : i32
    return %arg0, %c0_i32 : i32, i32
  }
  func.func @transform_1(%arg0: i32) -> (i32, i32) {
    %c0_i32 = arith.constant 0 : i32
    %c0_i32_0 = arith.constant 0 : i32
    return %arg0, %c0_i32 : i32, i32
  }
  func.func @transform_2(%arg0: i32) -> (i32, i32) {
    %c0_i32 = arith.constant 0 : i32
    %c0_i32_0 = arith.constant 0 : i32
    return %arg0, %c0_i32 : i32, i32
  }
  func.func @transform_3(%arg0: i32) -> (i32, i32) {
    %c0_i32 = arith.constant 0 : i32
    %c0_i32_0 = arith.constant 0 : i32
    return %arg0, %c0_i32 : i32, i32
  }
}

</mosaic_0001>

<llo_original>
// kernel: tpu_custom_call.1
$region0: #{tpu_custom_call.1}
  #allocation0 [shape = 'u32[]', space=smem, size = 0x4, offset = 0x4, fixed_abs, tag = 'smem constant byte address 0x4 - core index']
  #allocation1 [shape = 'u32[144,128]{1,0:T(1,128)}', space=vmem, size = 0x12000, scoped, tag = 'internal scratch']
  %s0 = inlined_call_operand.hbm [shape: f32[1,128], index: 0, kind: input, shape index: {}]
  %s1 = inlined_call_operand.vmem [shape: f32[1,128], index: 1, kind: input, shape index: {}]
  %s2 = inlined_call_operand.vmem [shape: s8[1,128], index: 2, kind: input, shape index: {}]
  %s3 = inlined_call_operand.hbm [shape: f32[1,128], index: 3, kind: output, shape index: {}]
  %s4 = sld [smem:[#allocation0]]
  $region26: #{tpu_custom_call.1} parent=0
    _
  %s6 = ssub.s32 1, %s4
  %s7 = scalar_select 0, %s6, %s4
  $region1: #{tpu_custom_call.1} parent=0
    #allocation2 [shape = 'u8[512]{0}', space=vmem, size = 0x400, scoped, tag = 'input window, operand 0, single buffered']
    #allocation3 [shape = 's32[1]{0}', space=sflag, size = 0x4, scoped, tag = 'scoped memory for tpu_custom_call.1']
    #allocation4 [shape = 's32[1]{0}', space=sflag, size = 0x4, scoped, tag = 'scoped memory for tpu_custom_call.1']
    #allocation5 [shape = 'u8[512]{0}', space=vmem, size = 0x400, scoped, tag = 'output window, operand 0, single buffered']
    %8 = vsyncpa [#allocation3], 0
    %9 = vsyncpa [#allocation4], 0
    // Predicated region
    $region2: #{tpu_custom_call.1} parent=1 // pred_check
      _
    $region3: #{tpu_custom_call.1} parent=1 // pred_check_branch
      %11 = sbr.rel (0) target = $region5
    $region4: #{tpu_custom_call.1} parent=1 // pred_region
      %s13 = ssub.s32 16, 16
      %14 = vsyncadd [#allocation3], %s13
      %s16 = sshll.u32 [#allocation2], 4
      %s17 = int_to_ptr.vmem [resolvable:$true] %s16
      %19 = dma.hbm_to_vmem [thread:$0]  %s0, 16, %s17, [#allocation3]
    $region5: #{tpu_custom_call.1} parent=1 // pred_fallthru
      _
    // Predicated region
    $region6: #{tpu_custom_call.1} parent=1 // pred_check
      _
    $region7: #{tpu_custom_call.1} parent=1 // pred_check_branch
      %21 = sbr.rel (0) target = $region9
    $region8: #{tpu_custom_call.1} parent=1 // pred_region
      _
    $region9: #{tpu_custom_call.1} parent=1 // pred_fallthru
      _
    // Predicated region
    $region10: #{tpu_custom_call.1} parent=1 // pred_check
      _
    $region11: #{tpu_custom_call.1} parent=1 // pred_check_branch
      %23 = sbr.rel (0) target = $region13
    $region12: #{tpu_custom_call.1} parent=1 // pred_region
      _
    $region13: #{tpu_custom_call.1} parent=1 // pred_fallthru
      _
    // Predicated region
    $region14: #{tpu_custom_call.1} parent=1 // pred_check
      _
    $region15: #{tpu_custom_call.1} parent=1 // pred_check_branch
      %25 = sbr.rel (0) target = $region17
    $region16: #{tpu_custom_call.1} parent=1 // pred_region
      %26 = dma.done [#allocation3], 16
    $region17: #{tpu_custom_call.1} parent=1 // pred_fallthru
      _
    %v27 = vld [vmem:[%s2] sm:$0x1]
    %v28 = vunpack.c.0.s8 %v27
    %v29 = vcvt.s32.f32 %v28
    %v30 = vld [vmem:[#allocation2] sm:$0x1]
    %v31 = vld [vmem:[%s1] sm:$0x1]
    %v32 = vsub.f32 %v30, %v31
    %v33 = vand.u32 2147483647, %v32
    %v34 = vmul.f32 %v33, %v29
    %35 = vst [vmem:[#allocation5] sm:$0x1] %v34
    // Predicated region
    $region18: #{tpu_custom_call.1} parent=1 // pred_check
      _
    $region19: #{tpu_custom_call.1} parent=1 // pred_check_branch
      %37 = sbr.rel (0) target = $region21
    $region20: #{tpu_custom_call.1} parent=1 // pred_region
      %s39 = ssub.s32 16, 16
      %40 = vsyncadd [#allocation4], %s39
      %s42 = sshll.u32 [#allocation5], 4
      %s43 = int_to_ptr.vmem [resolvable:$true] %s42
      %45 = dma.vmem_to_hbm [thread:$0]  %s43, 16, %s3, [#allocation4]
    $region21: #{tpu_custom_call.1} parent=1 // pred_fallthru
      _
    // Predicated region
    $region22: #{tpu_custom_call.1} parent=1 // pred_check
      _
    $region23: #{tpu_custom_call.1} parent=1 // pred_check_branch
      %47 = sbr.rel (0) target = $region25
    $region24: #{tpu_custom_call.1} parent=1 // pred_region
      %48 = dma.done [#allocation4], 16
    $region25: #{tpu_custom_call.1} parent=1 // pred_fallthru
      _
    %49 = vsyncpa [#allocation3], 1
    %50 = vsyncpa [#allocation4], 1

</llo_original>
